<compile_context>
chip_gen: v7x
topology: tpu7x:2x2x1
jax: 0.10.0
libtpu: 0.0.40
codegen_flags: <defaults>
</compile_context>

<pallas_src>
import functools

import jax
import jax.numpy as jnp
from jax import lax
from jax.experimental import pallas as pl
from jax.experimental.pallas import tpu as pltpu

_BN_EPS = 1e-5


def _round_up(x, m):
    return ((x + m - 1) // m) * m


# --------------------------- shared kernel helpers ---------------------------
def _conv_prelu(a_ref, patches_ref, w_ref, b_ref):
    """conv(GEMM)+bias+PReLU in the transposed layout:
       y^T (C_pad, TM) = w2d^T (C_pad, CK_pad) @ patches^T (CK_pad, TM)."""
    y = jnp.dot(w_ref[...], patches_ref[...], preferred_element_type=jnp.float32)
    y = y + b_ref[...]                            # (C_pad, 1) broadcast over lanes
    # Dropout(p=0.0) is the identity.
    # TODO(synk): p > 0 in training mode would need a pltpu.prng_* based mask.
    a = a_ref[0]                                  # shared PReLU parameter (SMEM)
    return jnp.where(y >= 0.0, y, a * y)


def _masked_partial_stats(y, tile_idx, tile_cols, n_valid_cols):
    """Per-tile sum / sum-of-squares over valid (non-padded) N*L_out columns."""
    col = tile_idx * tile_cols + lax.broadcasted_iota(jnp.int32, (1, tile_cols), 1)
    ym = jnp.where(col < n_valid_cols, y, 0.0)
    s = jnp.sum(ym, axis=1, keepdims=True)        # (C_pad, 1) cross-lane (XLU)
    ss = jnp.sum(ym * ym, axis=1, keepdims=True)  # (C_pad, 1)
    return s, ss


# ------------------------------ pass-1 kernels -------------------------------
def _stats_kernel(a_ref, patches_ref, w_ref, b_ref, part_ref, *,
                  tile_cols, n_valid_cols):
    """Recompute scheme pass 1: partial BN stats only (no y written to HBM)."""
    i = pl.program_id(0)
    y = _conv_prelu(a_ref, patches_ref, w_ref, b_ref)
    s, ss = _masked_partial_stats(y, i, tile_cols, n_valid_cols)
    part_ref[0, :, 0:1] = s                       # two direct stores, no concat
    part_ref[0, :, 1:2] = ss


def _conv_store_stats_kernel(a_ref, patches_ref, w_ref, b_ref, y_ref, part_ref, *,
                             tile_cols, n_valid_cols):
    """Stored-intermediate scheme pass 1: y (matmul_dtype) + partial BN stats."""
    i = pl.program_id(0)
    y = _conv_prelu(a_ref, patches_ref, w_ref, b_ref)
    y_ref[...] = y.astype(y_ref.dtype)            # bf16 (or f32) intermediate
    s, ss = _masked_partial_stats(y, i, tile_cols, n_valid_cols)
    part_ref[0, :, 0:1] = s
    part_ref[0, :, 1:2] = ss


# ------------------------------ pass-2 kernels -------------------------------
def _conv_bn_kernel(a_ref, patches_ref, w_ref, b_ref, ss_ref, o_ref):
    """Recompute scheme pass 2: re-run GEMM+bias+PReLU, apply folded BN."""
    y = _conv_prelu(a_ref, patches_ref, w_ref, b_ref)
    o_ref[...] = (y * ss_ref[:, 0:1] + ss_ref[:, 1:2]).astype(o_ref.dtype)


def _bn_apply_kernel(y_ref, ss_ref, o_ref):
    """Stored-intermediate scheme pass 2: load y, apply folded BN in f32."""
    y = y_ref[...].astype(jnp.float32)
    o_ref[...] = (y * ss_ref[:, 0:1] + ss_ref[:, 1:2]).astype(o_ref.dtype)


# --------------------------------- wrapper -----------------------------------
def _choose_tile_cols(nl, ck_pad, c_pad, in_itemsize, store_intermediate):
    # Working-set budget: double-buffered patches^T input + f32 result tile
    # (+ optional stored intermediate).  Kept well under v7x's 64 MiB VMEM so the
    # pipeline stays double-buffered on every generation; v5e/v6e simply get the
    # same (large) tile.  TM is a multiple of 128 (lane axis) and never exceeds
    # the padded problem size.
    budget = 24 * 1024 * 1024
    per_col = 2 * ck_pad * in_itemsize + 2 * c_pad * 4
    if store_intermediate:
        per_col += 2 * c_pad * in_itemsize
    tm = budget // max(per_col, 1)
    tm = max(128, min(2048, tm))
    tm = (tm // 128) * 128
    tm = min(tm, _round_up(nl, 128))
    return max(tm, 128)


def conv1d_block_bn(x, w, b, prelu_a, gamma, beta, *, stride,
                    matmul_dtype=jnp.bfloat16, store_intermediate=None):
    """x: (N, C_in, L) float32.  Returns (N, C_out, L_out), PyTorch NCL layout."""
    N, C_in, L = x.shape
    C_out, _, K = w.shape
    L_out = (L - K) // stride + 1
    NL = N * L_out
    CK = C_in * K

    in_dt = jnp.dtype(matmul_dtype)
    # Gate (perf review): for small contraction (CK) re-running the GEMM in pass 2
    # is cheaper than round-tripping an NL x C intermediate through HBM.
    if store_intermediate is None:
        store_intermediate = CK * in_dt.itemsize > 512

    CK_pad = _round_up(CK, 8)
    c_sub = 16 if (store_intermediate and in_dt.itemsize < 4) else 8
    C_pad = _round_up(C_out, c_sub)               # C_out on sublanes: pad 8/16

    TM = _choose_tile_cols(NL, CK_pad, C_pad, in_dt.itemsize, store_intermediate)
    NL_pad = _round_up(NL, TM)
    num_tiles = NL_pad // TM

    # --- glue: im2col (already transposed) + padding (layout plumbing only) ---
    # TODO(synk): move the im2col into the kernel (K accumulating dots over strided
    # pl.ds windows of x) to avoid materializing the Kx-duplicated patches in HBM.
    xc = x.astype(matmul_dtype)
    cols = [xc[:, :, k:k + stride * L_out:stride] for k in range(K)]  # (N,C_in,L_out)
    patchesT = jnp.transpose(jnp.stack(cols, axis=2), (1, 2, 0, 3)).reshape(CK, NL)
    patchesT = jnp.pad(patchesT, ((0, CK_pad - CK), (0, NL_pad - NL)))

    w2dT = jnp.pad(w.reshape(C_out, CK), ((0, C_pad - C_out), (0, CK_pad - CK)))
    w2dT = w2dT.astype(matmul_dtype)
    b_col = jnp.pad(b.astype(jnp.float32), (0, C_pad - C_out)).reshape(C_pad, 1)
    a1 = jnp.asarray(prelu_a, jnp.float32).reshape(1)

    cparams = pltpu.CompilerParams(
        dimension_semantics=("parallel",),        # megacore / v7x 2-TC shardable
        vmem_limit_bytes=48 * 1024 * 1024,        # <= v7x physical 64 MiB
    )

    common_in_specs = [
        pl.BlockSpec(memory_space=pltpu.MemorySpace.SMEM),     # PReLU a (scalar)
        pl.BlockSpec((CK_pad, TM), lambda i: (0, i)),          # patches^T tile
        pl.BlockSpec((C_pad, CK_pad), lambda i: (0, 0)),       # weights^T (resident)
        pl.BlockSpec((C_pad, 1), lambda i: (0, 0)),            # bias column
    ]
    part_spec = pl.BlockSpec((1, C_pad, 2), lambda i: (i, 0, 0))
    y_spec = pl.BlockSpec((C_pad, TM), lambda i: (0, i))       # lane-dense tiles

    # ---- pass 1: conv + bias + PReLU -> per-tile partial BN stats ----
    if store_intermediate:
        yT, partials = pl.pallas_call(
            functools.partial(_conv_store_stats_kernel,
                              tile_cols=TM, n_valid_cols=NL),
            out_shape=(jax.ShapeDtypeStruct((C_pad, NL_pad), matmul_dtype),
                       jax.ShapeDtypeStruct((num_tiles, C_pad, 2), jnp.float32)),
            grid_spec=pltpu.PrefetchScalarGridSpec(
                num_scalar_prefetch=0, grid=(num_tiles,),
                in_specs=common_in_specs,
                out_specs=[y_spec, part_spec]),
            compiler_params=cparams,
        )(a1, patchesT, w2dT, b_col)
    else:
        partials = pl.pallas_call(
            functools.partial(_stats_kernel, tile_cols=TM, n_valid_cols=NL),
            out_shape=jax.ShapeDtypeStruct((num_tiles, C_pad, 2), jnp.float32),
            grid_spec=pltpu.PrefetchScalarGridSpec(
                num_scalar_prefetch=0, grid=(num_tiles,),
                in_specs=common_in_specs,
                out_specs=part_spec),
            compiler_params=cparams,
        )(a1, patchesT, w2dT, b_col)

    # --- glue: finalize global BN stats, fold affine into (scale, shift) ---
    # TODO(synk): for very large N*L_out switch partials to (mean, M2) and merge
    # with Chan/Welford to avoid E[x^2]-E[x]^2 cancellation in f32.
    sums = jnp.sum(partials[:, :, 0], axis=0)
    sumsq = jnp.sum(partials[:, :, 1], axis=0)
    mean = sums / NL
    var = jnp.maximum(sumsq / NL - mean * mean, 0.0)       # biased var (training BN)
    gamma_p = jnp.pad(gamma.astype(jnp.float32), (0, C_pad - C_out))
    beta_p = jnp.pad(beta.astype(jnp.float32), (0, C_pad - C_out))
    scale = gamma_p * lax.rsqrt(var + _BN_EPS)
    shift = beta_p - mean * scale
    scaleshift = jnp.stack([scale, shift], axis=1)         # (C_pad, 2); pad rows -> 0

    # ---- pass 2: normalize with global stats; write only the final output ----
    if store_intermediate:
        outT = pl.pallas_call(
            _bn_apply_kernel,
            out_shape=jax.ShapeDtypeStruct((C_pad, NL_pad), jnp.float32),
            grid_spec=pltpu.PrefetchScalarGridSpec(
                num_scalar_prefetch=0, grid=(num_tiles,),
                in_specs=[y_spec, pl.BlockSpec((C_pad, 2), lambda i: (0, 0))],
                out_specs=y_spec),
            compiler_params=cparams,
        )(yT, scaleshift)
    else:
        outT = pl.pallas_call(
            _conv_bn_kernel,
            out_shape=jax.ShapeDtypeStruct((C_pad, NL_pad), jnp.float32),
            grid_spec=pltpu.PrefetchScalarGridSpec(
                num_scalar_prefetch=0, grid=(num_tiles,),
                in_specs=common_in_specs
                         + [pl.BlockSpec((C_pad, 2), lambda i: (0, 0))],
                out_specs=y_spec),
            compiler_params=cparams,
        )(a1, patchesT, w2dT, b_col, scaleshift)

    # strip padding; (C_out, N*L_out) -> (N, C_out, L_out)  (PyTorch NCL)
    out = outT[:C_out, :NL].reshape(C_out, N, L_out)
    return jnp.transpose(out, (1, 0, 2))


def _reference(x, w, b, prelu_a, gamma, beta, *, stride):
    """Pure-JAX reference matching PyTorch semantics (training-mode BN, p=0 dropout)."""
    y = lax.conv_general_dilated(
        x, w, window_strides=(stride,), padding="VALID",
        dimension_numbers=("NCH", "OIH", "NCH"),
    ) + b[None, :, None]
    y = jnp.where(y >= 0.0, y, prelu_a * y)
    mean = jnp.mean(y, axis=(0, 2), keepdims=True)
    var = jnp.mean((y - mean) ** 2, axis=(0, 2), keepdims=True)
    y = (y - mean) * lax.rsqrt(var + _BN_EPS)
    return gamma[None, :, None] * y + beta[None, :, None]


if __name__ == "__main__":
    # module config: Conv1dBlockBN(in_channel=4, out_channel=8, kernel_size=3, stride=2, p=0.0)
    N, C_in, L = 2, 4, 16
    C_out, K, stride = 8, 3, 2

    key = jax.random.PRNGKey(0)
    kx, kw, kb, kg, kbeta = jax.random.split(key, 5)

    x = jax.random.normal(kx, (N, C_in, L), jnp.float32)
    w = jax.random.normal(kw, (C_out, C_in, K), jnp.float32) * 0.2    # nn.Conv1d weight
    b = jax.random.normal(kb, (C_out,), jnp.float32) * 0.1            # nn.Conv1d bias
    prelu_a = jnp.float32(0.25)                                       # nn.PReLU default
    gamma = 1.0 + 0.1 * jax.random.normal(kg, (C_out,), jnp.float32)  # BN weight
    beta = 0.1 * jax.random.normal(kbeta, (C_out,), jnp.float32)      # BN bias

    ref = _reference(x, w, b, prelu_a, gamma, beta, stride=stride)
    L_out = (L - K) // stride + 1

    # Exact-precision path (f32 MXU inputs), recompute scheme (default, small CK).
    out_f32 = jax.block_until_ready(conv1d_block_bn(
        x, w, b, prelu_a, gamma, beta, stride=stride, matmul_dtype=jnp.float32))
    assert out_f32.shape == (N, C_out, L_out)
    assert jnp.allclose(out_f32, ref, atol=1e-4, rtol=1e-4), "f32 recompute path mismatch"

    # Exact-precision path, stored-intermediate scheme (large-CK branch), forced.
    out_f32_si = jax.block_until_ready(conv1d_block_bn(
        x, w, b, prelu_a, gamma, beta, stride=stride, matmul_dtype=jnp.float32,
        store_intermediate=True))
    assert jnp.allclose(out_f32_si, ref, atol=1e-4, rtol=1e-4), "f32 stored-intermediate mismatch"

    # Default fast path: bf16 MXU inputs, f32 accumulation/BN, recompute scheme.
    out_bf16 = jax.block_until_ready(conv1d_block_bn(
        x, w, b, prelu_a, gamma, beta, stride=stride))
    assert out_bf16.shape == (N, C_out, L_out)
    assert jnp.allclose(out_bf16, ref, atol=5e-2, rtol=5e-2), "bf16 recompute path mismatch"

    # bf16 with bf16 stored intermediate (forced, covers the large-CK branch).
    out_bf16_si = jax.block_until_ready(conv1d_block_bn(
        x, w, b, prelu_a, gamma, beta, stride=stride, store_intermediate=True))
    assert jnp.allclose(out_bf16_si, ref, atol=5e-2, rtol=5e-2), "bf16 stored-intermediate mismatch"

    print("KERNEL_OK")
</pallas_src>

<mosaic_0001>
module attributes {stable_mosaic.version = 11 : i64} {
  func.func @_stats_kernel(%arg0: i32, %arg1: memref<1xf32, #tpu.memory_space<smem>>, %arg2: memref<16x128xf32, #tpu.memory_space<vmem>>, %arg3: memref<8x16xf32, #tpu.memory_space<vmem>>, %arg4: memref<8x1xf32, #tpu.memory_space<vmem>>, %arg5: memref<1x8x2xf32, #tpu.memory_space<vmem>>) attributes {dimension_semantics = [#tpu.dimension_semantics<parallel>], iteration_bounds = array<i64: 1>, scalar_prefetch = 0 : i64, scratch_operands = 0 : i64, tpu.core_type = #tpu.core_type<tc>, window_params = [{transform_indices = @transform_0, window_bounds = array<i64: 1>}, {transform_indices = @transform_1, window_bounds = array<i64: 16, 128>}, {pipeline_mode = #tpu.pipeline_mode<synchronous>, transform_indices = @transform_2, window_bounds = array<i64: 8, 16>}, {pipeline_mode = #tpu.pipeline_mode<synchronous>, transform_indices = @transform_3, window_bounds = array<i64: 8, 1>}, {transform_indices = @transform_4, window_bounds = array<i64: 1, 8, 2>}]} {
    %c0 = arith.constant 0 : index
    %c0_0 = arith.constant 0 : index
    %0 = vector.load %arg3[%c0, %c0_0] : memref<8x16xf32, #tpu.memory_space<vmem>>, vector<8x16xf32>
    %c0_1 = arith.constant 0 : index
    %c0_2 = arith.constant 0 : index
    %1 = vector.load %arg2[%c0_1, %c0_2] : memref<16x128xf32, #tpu.memory_space<vmem>>, vector<16x128xf32>
    %cst = arith.constant dense<0.000000e+00> : vector<8x128xf32>
    %2 = tpu.matmul %0, %1, %cst {dimension_numbers = #tpu.dot_dimension_numbers<[1], [0], [0], [1], [0, 0, 1, 1], [], []>} : vector<8x16xf32>, vector<16x128xf32>, vector<8x128xf32> -> vector<8x128xf32>
    %c0_3 = arith.constant 0 : index
    %c0_4 = arith.constant 0 : index
    %3 = vector.load %arg4[%c0_3, %c0_4] : memref<8x1xf32, #tpu.memory_space<vmem>>, vector<8x1xf32>
    %4 = vector.broadcast %3 : vector<8x1xf32> to vector<8x128xf32>
    %5 = arith.addf %2, %4 : vector<8x128xf32>
    %c0_5 = arith.constant 0 : index
    %6 = memref.load %arg1[%c0_5] : memref<1xf32, #tpu.memory_space<smem>>
    %cst_6 = arith.constant 0.000000e+00 : f32
    %7 = vector.broadcast %cst_6 : f32 to vector<8x128xf32>
    %8 = arith.cmpf oge, %5, %7 : vector<8x128xf32>
    %9 = vector.broadcast %6 : f32 to vector<8x128xf32>
    %10 = arith.mulf %9, %5 : vector<8x128xf32>
    %11 = arith.select %8, %5, %10 : vector<8x128xi1>, vector<8x128xf32>
    %c128_i32 = arith.constant 128 : i32
    %12 = arith.muli %arg0, %c128_i32 : i32
    %13 = tpu.iota {dimensions = array<i32: 1>} : vector<1x128xi32>
    %14 = vector.broadcast %12 : i32 to vector<1x128xi32>
    %15 = arith.addi %14, %13 : vector<1x128xi32>
    %c14_i32 = arith.constant 14 : i32
    %16 = vector.broadcast %c14_i32 : i32 to vector<1x128xi32>
    %17 = arith.cmpi slt, %15, %16 : vector<1x128xi32>
    %cst_7 = arith.constant 0.000000e+00 : f32
    %18 = vector.shape_cast %17 : vector<1x128xi1> to vector<1x128xi1>
    %19 = vector.broadcast %18 : vector<1x128xi1> to vector<8x128xi1>
    %20 = vector.broadcast %cst_7 : f32 to vector<8x128xf32>
    %21 = arith.select %19, %11, %20 : vector<8x128xi1>, vector<8x128xf32>
    %cst_8 = arith.constant dense<0.000000e+00> : vector<8xf32>
    %22 = vector.multi_reduction <add>, %21, %cst_8 [1] : vector<8x128xf32> to vector<8xf32>
    %23 = vector.shape_cast %22 : vector<8xf32> to vector<8x1xf32>
    %24 = arith.mulf %21, %21 : vector<8x128xf32>
    %cst_9 = arith.constant dense<0.000000e+00> : vector<8xf32>
    %25 = vector.multi_reduction <add>, %24, %cst_9 [1] : vector<8x128xf32> to vector<8xf32>
    %26 = vector.shape_cast %25 : vector<8xf32> to vector<8x1xf32>
    %c0_10 = arith.constant 0 : index
    %c0_11 = arith.constant 0 : index
    %c0_12 = arith.constant 0 : index
    %27 = vector.load %arg5[%c0_10, %c0_11, %c0_12] : memref<1x8x2xf32, #tpu.memory_space<vmem>>, vector<1x8x1xf32>
    %28 = vector.shape_cast %27 : vector<1x8x1xf32> to vector<8x1xf32>
    %29 = vector.shape_cast %23 : vector<8x1xf32> to vector<1x8x1xf32>
    tpu.vector_store %arg5[%c0_10, %c0_11, %c0_12], %29 {strides = array<i32>} : memref<1x8x2xf32, #tpu.memory_space<vmem>>, vector<1x8x1xf32>,
    %c0_13 = arith.constant 0 : index
    %c0_14 = arith.constant 0 : index
    %c1 = arith.constant 1 : index
    %30 = vector.load %arg5[%c0_13, %c0_14, %c1] : memref<1x8x2xf32, #tpu.memory_space<vmem>>, vector<1x8x1xf32>
    %31 = vector.shape_cast %30 : vector<1x8x1xf32> to vector<8x1xf32>
    %32 = vector.shape_cast %26 : vector<8x1xf32> to vector<1x8x1xf32>
    tpu.vector_store %arg5[%c0_13, %c0_14, %c1], %32 {strides = array<i32>} : memref<1x8x2xf32, #tpu.memory_space<vmem>>, vector<1x8x1xf32>,
    return
  }
  func.func @transform_0(%arg0: i32) -> i32 {
    %c0_i32 = arith.constant 0 : i32
    %c0_i32_0 = arith.constant 0 : i32
    return %c0_i32 : i32
  }
  func.func @transform_1(%arg0: i32) -> (i32, i32) {
    %c0_i32 = arith.constant 0 : i32
    %c0_i32_0 = arith.constant 0 : i32
    return %c0_i32, %arg0 : i32, i32
  }
  func.func @transform_2(%arg0: i32) -> (i32, i32) {
    %c0_i32 = arith.constant 0 : i32
    %c0_i32_0 = arith.constant 0 : i32
    %c0_i32_1 = arith.constant 0 : i32
    return %c0_i32, %c0_i32_0 : i32, i32
  }
  func.func @transform_3(%arg0: i32) -> (i32, i32) {
    %c0_i32 = arith.constant 0 : i32
    %c0_i32_0 = arith.constant 0 : i32
    %c0_i32_1 = arith.constant 0 : i32
    return %c0_i32, %c0_i32_0 : i32, i32
  }
  func.func @transform_4(%arg0: i32) -> (i32, i32, i32) {
    %c0_i32 = arith.constant 0 : i32
    %c0_i32_0 = arith.constant 0 : i32
    %c0_i32_1 = arith.constant 0 : i32
    return %arg0, %c0_i32, %c0_i32_0 : i32, i32, i32
  }
}

</mosaic_0001>

<llo_original>
// kernel: tpu_custom_call.1
$region0: #{tpu_custom_call.1}
  #allocation0 [shape = 'u32[]', space=smem, size = 0x4, offset = 0x4, fixed_abs, tag = 'smem constant byte address 0x4 - core index']
  #allocation1 [shape = 'u32[144,128]{1,0:T(1,128)}', space=vmem, size = 0x12000, scoped, tag = 'internal scratch']
  #allocation2 [shape = 'f32[1]{0:T(128)S(6)}', space=smem, size = 0x200, scoped, tag = 'scoped memory for tpu_custom_call.1']
  %s0 = inlined_call_operand.<no memory space> [shape: f32[1], index: 0, kind: input, shape index: {}]
  %s1 = inlined_call_operand.hbm [shape: f32[16,128], index: 1, kind: input, shape index: {}]
  %s2 = inlined_call_operand.vmem [shape: f32[8,16], index: 2, kind: input, shape index: {}]
  %s3 = inlined_call_operand.vmem [shape: f32[8,1], index: 3, kind: input, shape index: {}]
  %s4 = inlined_call_operand.vmem [shape: f32[1,8,2], index: 4, kind: output, shape index: {}]
  %s5 = sld [smem:[#allocation0]]
  $region30: #{tpu_custom_call.1} parent=0
    _
  %s7 = ssub.s32 1, %s5
  %s8 = scalar_select 0, %s7, %s5
  %9 = sst [smem:[#allocation2]] %s0
  $region1: #{tpu_custom_call.1} parent=0
    #allocation3 [shape = 'u8[8192]{0}', space=vmem, size = 0x2000, scoped, tag = 'input window, operand 1, single buffered']
    #allocation4 [shape = 's32[1]{0}', space=sflag, size = 0x4, scoped, tag = 'scoped memory for tpu_custom_call.1']
    %10 = vsyncpa [#allocation4], 0
    // Predicated region
    $region2: #{tpu_custom_call.1} parent=1 // pred_check
      _
    $region3: #{tpu_custom_call.1} parent=1 // pred_check_branch
      %12 = sbr.rel (0) target = $region5
    $region4: #{tpu_custom_call.1} parent=1 // pred_region
      _
    $region5: #{tpu_custom_call.1} parent=1 // pred_fallthru
      _
    // Predicated region
    $region6: #{tpu_custom_call.1} parent=1 // pred_check
      _
    $region7: #{tpu_custom_call.1} parent=1 // pred_check_branch
      %14 = sbr.rel (0) target = $region9
    $region8: #{tpu_custom_call.1} parent=1 // pred_region
      %s16 = ssub.s32 256, 256
      %17 = vsyncadd [#allocation4], %s16
      %s18 = sshll.u32 [#allocation3], 4
      %s19 = int_to_ptr.vmem [resolvable:$true] %s18
      %24 = dma.hbm_to_vmem [thread:$0]  %s1, 256, %s19, [#allocation4], 128, 128, 8
    $region9: #{tpu_custom_call.1} parent=1 // pred_fallthru
      _
    // Predicated region
    $region10: #{tpu_custom_call.1} parent=1 // pred_check
      _
    $region11: #{tpu_custom_call.1} parent=1 // pred_check_branch
      %26 = sbr.rel (0) target = $region13
    $region12: #{tpu_custom_call.1} parent=1 // pred_region
      _
    $region13: #{tpu_custom_call.1} parent=1 // pred_fallthru
      _
    // Predicated region
    $region14: #{tpu_custom_call.1} parent=1 // pred_check
      _
    $region15: #{tpu_custom_call.1} parent=1 // pred_check_branch
      %28 = sbr.rel (0) target = $region17
    $region16: #{tpu_custom_call.1} parent=1 // pred_region
      _
    $region17: #{tpu_custom_call.1} parent=1 // pred_fallthru
      _
    // Predicated region
    $region18: #{tpu_custom_call.1} parent=1 // pred_check
      _
    $region19: #{tpu_custom_call.1} parent=1 // pred_check_branch
      %30 = sbr.rel (0) target = $region21
    $region20: #{tpu_custom_call.1} parent=1 // pred_region
      %31 = dma.done [#allocation4], 256
    $region21: #{tpu_custom_call.1} parent=1 // pred_fallthru
      _
    %v32 = vld [vmem:[%s2] sm:$0xff]
    %v33 = vld [vmem:[#allocation3] sm:$0xff]
    %v34 = vld [vmem:[#allocation3 + $0x8] sm:$0xff]
    %v35 = vld [vmem:[%s3] sm:$0xff]
    %37 = vset.pattern.permute.xlu0 0
    %38 = vperm.xlu0 %37, %v35
    %v39 = vpop.permute.xlu0 %38
    %vm41 = vcmask 130048
    %v43 = vsel %vm41, %v32, 0
    %45 = vmatprep.subr.mxu0 0.0
    %46 = vmatpush1.msra.mxu0 %v33
    %47 = vmatprep.subr.mxu0 0.0
    %48 = vmatpush1.msra.mxu0 %v34
    %49 = vmatprep.subr.mxu0 0.0
    %50 = vmatpush1.msra.mxu0 0.0
    %51 = vmatprep.subr.mxu0 0.0
    %52 = vmatpush1.msra.mxu0 0.0
    %53 = vmatprep.subr.mxu0 0.0
    %54 = vmatpush1.msra.mxu0 0.0
    %55 = vmatprep.subr.mxu0 0.0
    %56 = vmatpush1.msra.mxu0 0.0
    %57 = vmatprep.subr.mxu0 0.0
    %58 = vmatpush1.msra.mxu0 0.0
    %59 = vmatprep.subr.mxu0 0.0
    %60 = vmatpush1.msra.mxu0 0.0
    %61 = vmatprep.subr.mxu0 0.0
    %62 = vmatpush1.msra.mxu0 0.0
    %63 = vmatprep.subr.mxu0 0.0
    %64 = vmatpush1.msra.mxu0 0.0
    %65 = vmatprep.subr.mxu0 0.0
    %66 = vmatpush1.msra.mxu0 0.0
    %67 = vmatprep.subr.mxu0 0.0
    %68 = vmatpush1.msra.mxu0 0.0
    %69 = vmatprep.subr.mxu0 0.0
    %70 = vmatpush1.msra.mxu0 0.0
    %71 = vmatprep.subr.mxu0 0.0
    %72 = vmatpush1.msra.mxu0 0.0
    %73 = vmatprep.subr.mxu0 0.0
    %74 = vmatpush1.msra.mxu0 0.0
    %75 = vmatprep.subr.mxu0 0.0
    %76 = vmatpush1.msra.mxu0 0.0
    %77 = vmatprep.subr.mxu0 0.0
    %78 = vmatpush1.msra.mxu0 0.0
    %79 = vmatprep.subr.mxu0 0.0
    %80 = vmatpush1.msra.mxu0 0.0
    %81 = vmatprep.subr.mxu0 0.0
    %82 = vmatpush1.msra.mxu0 0.0
    %83 = vmatprep.subr.mxu0 0.0
    %84 = vmatpush1.msra.mxu0 0.0
    %85 = vmatprep.subr.mxu0 0.0
    %86 = vmatpush1.msra.mxu0 0.0
    %87 = vmatprep.subr.mxu0 0.0
    %88 = vmatpush1.msra.mxu0 0.0
    %89 = vmatprep.subr.mxu0 0.0
    %90 = vmatpush1.msra.mxu0 0.0
    %91 = vmatprep.subr.mxu0 0.0
    %92 = vmatpush1.msra.mxu0 0.0
    %93 = vmatprep.subr.mxu0 0.0
    %94 = vmatpush1.msra.mxu0 0.0
    %95 = vmatprep.subr.mxu0 0.0
    %96 = vmatpush1.msra.mxu0 0.0
    %97 = vmatprep.subr.mxu0 0.0
    %98 = vmatpush1.msra.mxu0 0.0
    %99 = vmatprep.subr.mxu0 0.0
    %100 = vmatpush1.msra.mxu0 0.0
    %101 = vmatprep.subr.mxu0 0.0
    %102 = vmatpush1.msra.mxu0 0.0
    %103 = vmatprep.subr.mxu0 0.0
    %104 = vmatpush1.msra.mxu0 0.0
    %105 = vmatprep.subr.mxu0 0.0
    %106 = vmatpush1.msra.mxu0 0.0
    %107 = vmatprep.subr.mxu0 0.0
    %108 = vmatpush1.msra.mxu0 0.0
    %109 = vmatprep.mubr.f32.mxu0 0.0
    %110 = vmatmul.mubr.f32.gmra.mrb[0].mxu0 %v43
    %v111 = vpop.f32.mrb[0].mxu0
    %v112 = vadd.f32 %v39, %v111
    %v113 = vpop.f32.mrb[0].mxu0
    %114 = vdwg.mxu0
    %s115 = sld [smem:[#allocation2]]
    %vm116 = vcmp.ge.f32.partialorder %v112, 0.0
    %v117 = vstv %s115
    %v118 = vmul.f32 %v117, %v112
    %v119 = vsel %vm116, %v112, %v118
    %s120 = smul.u32 0, 128
    %v121 = vlaneseq
    %v122 = vand.u32 %v121, 127
    %v123 = vstv %s120
    %v124 = vadd.s32 %v123, %v122
    %vm125 = vcmp.lt.s32.totalorder %v124, 14
    %v126 = vsel %vm125, 1, 0
    %vm127 = vcmp.eq.s32.totalorder %v126, 1
    %v128 = vsel %vm127, %v119, 0.0
    %129 = vadd.xlane.f32.xlu0 %v128
    %v130 = vpop.xlane.xlu0 %129
    %v131 = vmul.f32 %v128, %v128
    %132 = vadd.xlane.f32.xlu0 %v131
    %v133 = vpop.xlane.xlu0 %132
    %vm134 = vcmask 7168
    %135 = vst.msk [vmem:[%s4] sm:$0xff] %vm134, %v130
    %vm136 = vcmask 15368
    %137 = vst.msk [vmem:[%s4] sm:$0xff] %vm136, %v133
    // Predicated region
    $region22: #{tpu_custom_call.1} parent=1 // pred_check
      _
    $region23: #{tpu_custom_call.1} parent=1 // pred_check_branch
      %139 = sbr.rel (0) target = $region25
    $region24: #{tpu_custom_call.1} parent=1 // pred_region
      _
    $region25: #{tpu_custom_call.1} parent=1 // pred_fallthru
      _
    // Predicated region
    $region26: #{tpu_custom_call.1} parent=1 // pred_check
      _
    $region27: #{tpu_custom_call.1} parent=1 // pred_check_branch
      %141 = sbr.rel (0) target = $region29
    $region28: #{tpu_custom_call.1} parent=1 // pred_region
      _
    $region29: #{tpu_custom_call.1} parent=1 // pred_fallthru
      _
    %142 = vsyncpa [#allocation4], 1

</llo_original>
